<compile_context>
chip_gen: v7x
topology: tpu7x:2x2x1
jax: 0.10.0
libtpu: 0.0.40
codegen_flags: <defaults>
</compile_context>

<pallas_src>
import functools

import jax
import jax.numpy as jnp
from jax.experimental import pallas as pl
from jax.experimental.pallas import tpu as pltpu


def grn_kernel(x_ref, gamma_ref, beta_ref, o_ref, *, eps, sumsq_chunk):
    # x_ref block: (TB, C, Lp); gamma/beta block: (1, C, 1)
    tb, c, lp = x_ref.shape

    # ---- Reduction path: sum of squares over L, f32 accumulation ----------
    if sumsq_chunk is None:
        xf = x_ref[...].astype(jnp.float32)           # upcast BEFORE squaring
        ssq = jnp.sum(xf * xf, axis=-1, keepdims=True)          # (TB, C, 1)
    else:
        # Chunked accumulation straight from the VMEM ref: avoids a full-tile
        # f32 temporary (VMEM/vreg pressure), re-reads are free (HBM-bound).
        n_chunks = lp // sumsq_chunk

        def body(i, acc):
            off = pl.multiple_of(i * sumsq_chunk, sumsq_chunk)
            xc = x_ref[:, :, pl.ds(off, sumsq_chunk)].astype(jnp.float32)
            return acc + jnp.sum(xc * xc, axis=-1, keepdims=True)

        ssq = jax.lax.fori_loop(0, n_chunks, body,
                                jnp.zeros((tb, c, 1), jnp.float32))

    gx = jnp.sqrt(ssq)                                            # (TB, C, 1)

    # Nx = Gx / clamp(mean_C(Gx), min=eps)   (matches torch .clamp(min=eps))
    mean_gx = jnp.mean(gx, axis=1, keepdims=True)                 # (TB, 1, 1)
    inv = pl.reciprocal(jnp.maximum(mean_gx, eps), approx=False)  # exact, tiny
    nx = gx * inv                                                 # (TB, C, 1)

    # ---- Apply path (native dtype, folded epilogue) ------------------------
    #   gamma*(x*Nx) + beta + x == x*(gamma*Nx + 1) + beta
    gamma = gamma_ref[...].astype(jnp.float32)                    # (1, C, 1)
    x = x_ref[...]                                                # native dtype
    scale = (gamma * nx + 1.0).astype(x.dtype)                    # (TB, C, 1)
    beta = beta_ref[...].astype(x.dtype)                          # (1, C, 1)
    o_ref[...] = (x * scale + beta).astype(o_ref.dtype)


def _vmem_capacity_bytes():
    try:
        return int(getattr(pltpu.get_tpu_info(), "vmem_capacity_bytes",
                           64 << 20))
    except Exception:
        return 64 << 20  # conservative (v7x per-TensorCore)


def _pick_batch_block(B, per_batch_bytes, target_bytes):
    """Largest tb with tb*per_batch_bytes <= target (no divisor requirement),
    additionally capped at B//2 when B >= 2 so the parallel grid axis has at
    least 2 steps (v7x megacore sharding)."""
    cap = max(1, target_bytes // max(per_batch_bytes, 1))
    tb = min(B, cap)
    if B >= 2:
        tb = min(tb, max(1, B // 2))
    return max(1, tb)


def grn(x, gamma, beta, eps=1e-6):
    """x: (B, C, L); gamma, beta: (1, C, 1)."""
    B, C, L = x.shape
    itemsize = jnp.dtype(x.dtype).itemsize

    # Lane-dense padding of L to a multiple of 128 (zero padding leaves the
    # L2 norm over L unchanged; padded output columns are sliced off).
    Lp = ((L + 127) // 128) * 128
    x_in = x if Lp == L else jnp.pad(x, ((0, 0), (0, 0), (0, Lp - L)))

    per_batch_bytes = C * Lp * itemsize

    # VMEM-aware block target and request cap.
    vmem_cap = _vmem_capacity_bytes()
    big_vmem = vmem_cap >= (96 << 20)            # v5e/v6e: 128 MiB; v7x: 64 MiB
    target_bytes = (8 << 20) if big_vmem else (4 << 20)
    request_cap = (64 << 20) if big_vmem else (48 << 20)

    tb = _pick_batch_block(B, per_batch_bytes, target_bytes)
    nb = pl.cdiv(B, tb)
    block_bytes = tb * per_batch_bytes
    # 2x in + 2x out double buffers + f32 reduction temps + fixed margin.
    vmem_limit = int(min(request_cap,
                         max(32 << 20, 8 * block_bytes + (4 << 20))))

    # Chunked sum-of-squares only when it pays (large, chunk-aligned L).
    sumsq_chunk = 512 if (Lp % 512 == 0 and Lp >= 1024) else None

    kernel = functools.partial(grn_kernel, eps=eps, sumsq_chunk=sumsq_chunk)
    out = pl.pallas_call(
        kernel,
        out_shape=jax.ShapeDtypeStruct((B, C, Lp), x.dtype),
        grid_spec=pltpu.PrefetchScalarGridSpec(
            num_scalar_prefetch=0,
            grid=(nb,),
            in_specs=[
                pl.BlockSpec((tb, C, Lp), lambda b: (b, 0, 0)),   # x
                pl.BlockSpec((1, C, 1), lambda b: (0, 0, 0)),     # gamma
                pl.BlockSpec((1, C, 1), lambda b: (0, 0, 0)),     # beta
            ],
            out_specs=pl.BlockSpec((tb, C, Lp), lambda b: (b, 0, 0)),
        ),
        compiler_params=pltpu.CompilerParams(
            dimension_semantics=("parallel",),
            vmem_limit_bytes=vmem_limit),
    )(x_in, gamma, beta)

    if Lp != L:
        out = out[:, :, :L]
    return out


def grn_reference(x, gamma, beta, eps=1e-6):
    gx = jnp.linalg.norm(x, ord=2, axis=2, keepdims=True)
    nx = gx / jnp.maximum(jnp.mean(gx, axis=1, keepdims=True), eps)
    return gamma * (x * nx) + beta + x


if __name__ == "__main__":
    B, C, L = 2, 4, 16
    key = jax.random.PRNGKey(0)
    kx, kg, kb = jax.random.split(key, 3)

    x = jax.random.normal(kx, (B, C, L), dtype=jnp.float32)
    # nn.Parameter shapes are (1, dim, 1); torch inits them to zero, but we use
    # deterministic non-zero values so the kernel math is actually exercised.
    gamma = jax.random.normal(kg, (1, C, 1), dtype=jnp.float32) * 0.1
    beta = jax.random.normal(kb, (1, C, 1), dtype=jnp.float32) * 0.1

    out = jax.block_until_ready(grn(x, gamma, beta))
    ref = grn_reference(x, gamma, beta)

    assert out.shape == (B, C, L)
    # Exact reciprocal is used; tolerance covers only the folded-epilogue
    # reassociation, which is well below 1e-3 for f32 inputs.
    assert jnp.allclose(out, ref, atol=1e-3, rtol=1e-3), "mismatch vs reference"

    print("KERNEL_OK")
</pallas_src>

<mosaic_0001>
module attributes {stable_mosaic.version = 11 : i64} {
  func.func @grn_kernel(%arg0: i32, %arg1: memref<1x4x128xf32, #tpu.memory_space<vmem>>, %arg2: memref<1x4x1xf32, #tpu.memory_space<vmem>>, %arg3: memref<1x4x1xf32, #tpu.memory_space<vmem>>, %arg4: memref<1x4x128xf32, #tpu.memory_space<vmem>>) attributes {dimension_semantics = [#tpu.dimension_semantics<parallel>], iteration_bounds = array<i64: 2>, scalar_prefetch = 0 : i64, scratch_operands = 0 : i64, tpu.core_type = #tpu.core_type<tc>, window_params = [{transform_indices = @transform_0, window_bounds = array<i64: 1, 4, 128>}, {pipeline_mode = #tpu.pipeline_mode<synchronous>, transform_indices = @transform_1, window_bounds = array<i64: 1, 4, 1>}, {pipeline_mode = #tpu.pipeline_mode<synchronous>, transform_indices = @transform_2, window_bounds = array<i64: 1, 4, 1>}, {transform_indices = @transform_3, window_bounds = array<i64: 1, 4, 128>}]} {
    %c0 = arith.constant 0 : index
    %c0_0 = arith.constant 0 : index
    %c0_1 = arith.constant 0 : index
    %0 = vector.load %arg1[%c0, %c0_0, %c0_1] : memref<1x4x128xf32, #tpu.memory_space<vmem>>, vector<1x4x128xf32>
    %1 = arith.mulf %0, %0 : vector<1x4x128xf32>
    %cst = arith.constant dense<0.000000e+00> : vector<1x4xf32>
    %2 = vector.multi_reduction <add>, %1, %cst [2] : vector<1x4x128xf32> to vector<1x4xf32>
    %3 = vector.shape_cast %2 : vector<1x4xf32> to vector<1x4x1xf32>
    %4 = math.sqrt %3 : vector<1x4x1xf32>
    %cst_2 = arith.constant dense<0.000000e+00> : vector<1x1xf32>
    %5 = vector.multi_reduction <add>, %4, %cst_2 [1] : vector<1x4x1xf32> to vector<1x1xf32>
    %6 = vector.shape_cast %5 : vector<1x1xf32> to vector<1x1x1xf32>
    %cst_3 = arith.constant 4.000000e+00 : f32
    %7 = vector.broadcast %cst_3 : f32 to vector<1x1x1xf32>
    %8 = arith.divf %6, %7 : vector<1x1x1xf32>
    %cst_4 = arith.constant 9.99999997E-7 : f32
    %9 = vector.broadcast %cst_4 : f32 to vector<1x1x1xf32>
    %10 = arith.maximumf %8, %9 : vector<1x1x1xf32>
    %11 = tpu.reciprocal %10 : vector<1x1x1xf32> -> vector<1x1x1xf32>
    %12 = vector.broadcast %11 : vector<1x1x1xf32> to vector<1x4x1xf32>
    %13 = arith.mulf %4, %12 : vector<1x4x1xf32>
    %c0_5 = arith.constant 0 : index
    %c0_6 = arith.constant 0 : index
    %c0_7 = arith.constant 0 : index
    %14 = vector.load %arg2[%c0_5, %c0_6, %c0_7] : memref<1x4x1xf32, #tpu.memory_space<vmem>>, vector<1x4x1xf32>
    %c0_8 = arith.constant 0 : index
    %c0_9 = arith.constant 0 : index
    %c0_10 = arith.constant 0 : index
    %15 = vector.load %arg1[%c0_8, %c0_9, %c0_10] : memref<1x4x128xf32, #tpu.memory_space<vmem>>, vector<1x4x128xf32>
    %16 = arith.mulf %14, %13 : vector<1x4x1xf32>
    %cst_11 = arith.constant 1.000000e+00 : f32
    %17 = vector.broadcast %cst_11 : f32 to vector<1x4x1xf32>
    %18 = arith.addf %16, %17 : vector<1x4x1xf32>
    %c0_12 = arith.constant 0 : index
    %c0_13 = arith.constant 0 : index
    %c0_14 = arith.constant 0 : index
    %19 = vector.load %arg3[%c0_12, %c0_13, %c0_14] : memref<1x4x1xf32, #tpu.memory_space<vmem>>, vector<1x4x1xf32>
    %20 = vector.broadcast %18 : vector<1x4x1xf32> to vector<1x4x128xf32>
    %21 = arith.mulf %15, %20 : vector<1x4x128xf32>
    %22 = vector.broadcast %19 : vector<1x4x1xf32> to vector<1x4x128xf32>
    %23 = arith.addf %21, %22 : vector<1x4x128xf32>
    %c0_15 = arith.constant 0 : index
    %c0_16 = arith.constant 0 : index
    %c0_17 = arith.constant 0 : index
    %24 = vector.load %arg4[%c0_15, %c0_16, %c0_17] : memref<1x4x128xf32, #tpu.memory_space<vmem>>, vector<1x4x128xf32>
    tpu.vector_store %arg4[%c0_15, %c0_16, %c0_17], %23 {strides = array<i32>} : memref<1x4x128xf32, #tpu.memory_space<vmem>>, vector<1x4x128xf32>,
    return
  }
  func.func @transform_0(%arg0: i32) -> (i32, i32, i32) {
    %c0_i32 = arith.constant 0 : i32
    %c0_i32_0 = arith.constant 0 : i32
    %c0_i32_1 = arith.constant 0 : i32
    return %arg0, %c0_i32, %c0_i32_0 : i32, i32, i32
  }
  func.func @transform_1(%arg0: i32) -> (i32, i32, i32) {
    %c0_i32 = arith.constant 0 : i32
    %c0_i32_0 = arith.constant 0 : i32
    %c0_i32_1 = arith.constant 0 : i32
    %c0_i32_2 = arith.constant 0 : i32
    return %c0_i32, %c0_i32_0, %c0_i32_1 : i32, i32, i32
  }
  func.func @transform_2(%arg0: i32) -> (i32, i32, i32) {
    %c0_i32 = arith.constant 0 : i32
    %c0_i32_0 = arith.constant 0 : i32
    %c0_i32_1 = arith.constant 0 : i32
    %c0_i32_2 = arith.constant 0 : i32
    return %c0_i32, %c0_i32_0, %c0_i32_1 : i32, i32, i32
  }
  func.func @transform_3(%arg0: i32) -> (i32, i32, i32) {
    %c0_i32 = arith.constant 0 : i32
    %c0_i32_0 = arith.constant 0 : i32
    %c0_i32_1 = arith.constant 0 : i32
    return %arg0, %c0_i32, %c0_i32_0 : i32, i32, i32
  }
}

</mosaic_0001>

<llo_original>
// kernel: tpu_custom_call.1
$region0: #{tpu_custom_call.1}
  #allocation0 [shape = 'u32[]', space=smem, size = 0x4, offset = 0x4, fixed_abs, tag = 'smem constant byte address 0x4 - core index']
  #allocation1 [shape = 'u32[144,128]{1,0:T(1,128)}', space=vmem, size = 0x12000, scoped, tag = 'internal scratch']
  %s0 = inlined_call_operand.vmem [shape: f32[2,4,128], index: 0, kind: input, shape index: {}]
  %s1 = inlined_call_operand.vmem [shape: f32[1,4,1], index: 1, kind: input, shape index: {}]
  %s2 = inlined_call_operand.vmem [shape: f32[1,4,1], index: 2, kind: input, shape index: {}]
  %s3 = inlined_call_operand.hbm [shape: f32[2,4,128], index: 3, kind: output, shape index: {}]
  %s4 = sld [smem:[#allocation0]]
  $region45: #{tpu_custom_call.1} parent=0
    _
  %s6 = ssub.s32 1, %s4
  %s7 = scalar_select 0, %s6, %s4
  $region1: #{tpu_custom_call.1} parent=0
    #allocation2 [shape = 'u8[4096]{0}', space=vmem, size = 0x1000, scoped, tag = 'output window, operand 0']
    #allocation3 [shape = 's32[2]{0}', space=sflag, size = 0x8, scoped, tag = 'scoped memory for tpu_custom_call.1']
    %8 = vsyncpa [#allocation3], 0
    %s9 = scalar_lea.sflag [#allocation3], 1
    %10 = vsyncpa %s9, 0
    loop: start=0, step=1, limit=4
    $region2: #{tpu_custom_call.1} parent=1 // loop_pre_header
      _
    $region3: #{tpu_custom_call.1} parent=1 // loop_header
      %s12 = sphi 0, %s16
      %p13 = scmp.ge.s32.totalorder %s12, 4
      %s22 = sphi 0, %s24
      %s25 = sphi 0, %s22
      %s26 = sphi 0, %s25
      %s42 = sphi 0, %s26
      %s46 = sphi 0, %s46
      %s48 = sphi 0, %s46
      %s49 = sphi 0, %s48
      %s63 = sphi 0, %s49
      %s67 = sphi 0, %s67
      %s69 = sphi 0, %s67
      %s70 = sphi 0, %s69
      %s84 = sphi 0, %s70
      %s90 = sphi 0, %s92
      %s93 = sphi 0, %s90
      %s94 = sphi 0, %s93
      %s110 = sphi 0, %s94
    $region4: #{tpu_custom_call.1} parent=1 // loop_header_branch
      %15 = sbr.rel (%p13) target = $region8
    $region5: #{tpu_custom_call.1} parent=1 // loop_body
      %s17 = ssub.s32 %s12, 1
      %s18 = ssub.s32 %s12, 2
      %s19 = sadd.s32 %s12, 1
      %s20 = ssub.s32 %s12, %s19
      %p21 = scmp.eq.s32.totalorder %s20, 0
      %s23 = sadd.s32 %s22, 1
      %s24 = scalar_select %p21, %s22, %s23
      %p27 = pneg %p21
      %p28 = scmp.eq.s32.totalorder %s12, 1
      %p29 = por %p27, %p28
      %p30 = scmp.ne.s32.totalorder %s22, %s25
      %p31 = scmp.eq.s32.totalorder %s12, 0
      %p32 = por %p30, %p31
      %p33 = scmp.ne.s32.totalorder %s22, %s25
      %p34 = scmp.eq.s32.totalorder %s17, 1
      %p35 = por %p33, %p34
      %p36 = scmp.ne.s32.totalorder %s25, %s26
      %p37 = scmp.eq.s32.totalorder %s17, 0
      %p38 = por %p36, %p37
      %p39 = scmp.ne.s32.totalorder %s25, %s26
      %p40 = scmp.eq.s32.totalorder %s18, 1
      %p41 = por %p39, %p40
      %p43 = scmp.ne.s32.totalorder %s26, %s42
      %p44 = scmp.eq.s32.totalorder %s18, 0
      %p45 = por %p43, %p44
      %s47 = sadd.s32 %s46, 1
      %p50 = scmp.eq.s32.totalorder %s12, 1
      %p51 = scmp.ne.s32.totalorder %s46, %s48
      %p52 = scmp.eq.s32.totalorder %s12, 0
      %p53 = por %p51, %p52
      %p54 = scmp.ne.s32.totalorder %s46, %s48
      %p55 = scmp.eq.s32.totalorder %s17, 1
      %p56 = por %p54, %p55
      %p57 = scmp.ne.s32.totalorder %s48, %s49
      %p58 = scmp.eq.s32.totalorder %s17, 0
      %p59 = por %p57, %p58
      %p60 = scmp.ne.s32.totalorder %s48, %s49
      %p61 = scmp.eq.s32.totalorder %s18, 1
      %p62 = por %p60, %p61
      %p64 = scmp.ne.s32.totalorder %s49, %s63
      %p65 = scmp.eq.s32.totalorder %s18, 0
      %p66 = por %p64, %p65
      %s68 = sadd.s32 %s67, 1
      %p71 = scmp.eq.s32.totalorder %s12, 1
      %p72 = scmp.ne.s32.totalorder %s67, %s69
      %p73 = scmp.eq.s32.totalorder %s12, 0
      %p74 = por %p72, %p73
      %p75 = scmp.ne.s32.totalorder %s67, %s69
      %p76 = scmp.eq.s32.totalorder %s17, 1
      %p77 = por %p75, %p76
      %p78 = scmp.ne.s32.totalorder %s69, %s70
      %p79 = scmp.eq.s32.totalorder %s17, 0
      %p80 = por %p78, %p79
      %p81 = scmp.ne.s32.totalorder %s69, %s70
      %p82 = scmp.eq.s32.totalorder %s18, 1
      %p83 = por %p81, %p82
      %p85 = scmp.ne.s32.totalorder %s70, %s84
      %p86 = scmp.eq.s32.totalorder %s18, 0
      %p87 = por %p85, %p86
      %s88 = ssub.s32 %s12, %s19
      %p89 = scmp.eq.s32.totalorder %s88, 0
      %s91 = sadd.s32 %s90, 1
      %s92 = scalar_select %p89, %s90, %s91
      %p95 = pneg %p89
      %p96 = scmp.eq.s32.totalorder %s12, 1
      %p97 = por %p95, %p96
      %p98 = scmp.ne.s32.totalorder %s90, %s93
      %p99 = scmp.eq.s32.totalorder %s12, 0
      %p100 = por %p98, %p99
      %p101 = scmp.ne.s32.totalorder %s90, %s93
      %p102 = scmp.eq.s32.totalorder %s17, 1
      %p103 = por %p101, %p102
      %p104 = scmp.ne.s32.totalorder %s93, %s94
      %p105 = scmp.eq.s32.totalorder %s17, 0
      %p106 = por %p104, %p105
      %p107 = scmp.ne.s32.totalorder %s93, %s94
      %p108 = scmp.eq.s32.totalorder %s18, 1
      %p109 = por %p107, %p108
      %p111 = scmp.ne.s32.totalorder %s94, %s110
      %p112 = scmp.eq.s32.totalorder %s18, 0
      %p113 = por %p111, %p112
      %p114 = scmp.le.s32.totalorder 1, %s12
      %p115 = scmp.lt.s32.totalorder %s12, 3
      %p116 = pnand %p114, %p115
      %p117 = pneg %p116
      // Predicated region
      $region9: #{tpu_custom_call.1} parent=5 // pred_check
        _
      $region10: #{tpu_custom_call.1} parent=5 // pred_check_branch
        %119 = sbr.rel (%p116) target = $region12
      $region11: #{tpu_custom_call.1} parent=5 // pred_region
        %s120 = ssub.s32 %s12, 1
        // Predicated region
        $region13: #{tpu_custom_call.1} parent=11 // pred_check
          %p121 = pneg %p59
        $region14: #{tpu_custom_call.1} parent=11 // pred_check_branch
          %123 = sbr.rel (%p121) target = $region16
        $region15: #{tpu_custom_call.1} parent=11 // pred_region
          _
        $region16: #{tpu_custom_call.1} parent=11 // pred_fallthru
          _
        // Predicated region
        $region17: #{tpu_custom_call.1} parent=11 // pred_check
          %p124 = pneg %p80
        $region18: #{tpu_custom_call.1} parent=11 // pred_check_branch
          %126 = sbr.rel (%p124) target = $region20
        $region19: #{tpu_custom_call.1} parent=11 // pred_region
          _
        $region20: #{tpu_custom_call.1} parent=11 // pred_fallthru
          _
      $region12: #{tpu_custom_call.1} parent=5 // pred_fallthru
        _
      %p127 = scmp.lt.s32.totalorder %s12, 2
      // Predicated region
      $region21: #{tpu_custom_call.1} parent=5 // pred_check
        %p128 = pneg %p127
      $region22: #{tpu_custom_call.1} parent=5 // pred_check_branch
        %130 = sbr.rel (%p128) target = $region24
      $region23: #{tpu_custom_call.1} parent=5 // pred_region
        // Predicated region
        $region25: #{tpu_custom_call.1} parent=23 // pred_check
          %p131 = pneg %p32
        $region26: #{tpu_custom_call.1} parent=23 // pred_check_branch
          %133 = sbr.rel (%p131) target = $region28
        $region27: #{tpu_custom_call.1} parent=23 // pred_region
          %p134 = scmp.lt.s32.totalorder %s12, 1
          %s135 = scalar_select %p134, %s12, 1
          %s136 = smul.addr %s135, 4
          %s137 = scalar_lea.vmem %s0, %s136
        $region28: #{tpu_custom_call.1} parent=23 // pred_fallthru
          _
      $region24: #{tpu_custom_call.1} parent=5 // pred_fallthru
        _
      %p138 = scmp.le.s32.totalorder 1, %s12
      %p139 = scmp.lt.s32.totalorder %s12, 3
      %p140 = pnand %p138, %p139
      %p141 = pneg %p140
      // Predicated region
      $region29: #{tpu_custom_call.1} parent=5 // pred_check
        _
      $region30: #{tpu_custom_call.1} parent=5 // pred_check_branch
        %143 = sbr.rel (%p140) target = $region32
      $region31: #{tpu_custom_call.1} parent=5 // pred_region
        %s144 = ssub.s32 %s12, 1
        %p145 = scmp.lt.s32.totalorder %s17, 1
        %s146 = scalar_select %p145, %s17, 1
        %s147 = smul.addr %s146, 4
        %s148 = scalar_lea.vmem %s0, %s147
        %p149 = pneg %p38
        %p150 = pneg %p35
        %p151 = pneg %p59
        %p152 = pneg %p56
        %p153 = pneg %p80
        %p154 = pneg %p77
        %p155 = pneg %p106
        %p156 = pneg %p103
        %s157 = sand.u32 %s93, 1
        %s158 = scalar_lea.sflag [#allocation3], %s157
        %s159 = sand.u32 %s93, 1
        %s160 = smul.addr %s159, 4
        %s161 = scalar_lea.vmem [#allocation2], %s160
        %p162 = scmp.lt.s32.totalorder %s17, 1
        %s163 = scalar_select %p162, %s17, 1
        %s164 = smul.addr %s163, 4
        %s165 = scalar_lea.vmem %s0, %s164
        %v166 = vld [vmem:[%s165] sm:$0xf]
        %v167 = vmul.f32 %v166, %v166
        %vm168 = vcmask 1043456
        %v169 = vsel %vm168, %v167, 0.0
        %170 = vadd.xlane.f32.xlu0 %v169
        %v171 = vpop.xlane.xlu0 %170
        %v172 = vrsqrt.pop %v171
        %v173 = vmul.f32 %v171, %v172
        %vm174 = vcmp.eq.f32.partialorder %v171, inf
        %v175 = vsel %vm174, %v171, %v173
        %vm176 = vcmp.eq.f32.partialorder %v171, 0.0
        %v177 = vand.u32 %v171, 2147483648
        %v178 = vsel %vm176, %v177, %v175
        %v179 = vsel %vm168, %v178, 0.0
        %v180 = vrot.slane %v179, 4
        %v181 = vadd.f32 %v179, %v180
        %v182 = vrot.slane %v181, 2
        %v183 = vadd.f32 %v181, %v182
        %v184 = vrot.slane %v183, 1
        %v185 = vadd.f32 %v183, %v184
        %v186 = vrcp.pop 4.0
        %v187 = vmul.f32 %v185, %v186
        %v188 = vmax.f32 %v187, 1e-06
        %v189 = vrcp.pop %v188
        %v190 = vmul.f32 %v178, %v189
        %v191 = vld [vmem:[%s1] sm:$0xf]
        %v192 = vmul.f32 %v191, %v190
        %v193 = vadd.f32 %v192, 1.0
        %v194 = vld [vmem:[%s2] sm:$0xf]
        %196 = vset.pattern.permute.xlu0 0
        %197 = vperm.xlu0 %196, %v193
        %v198 = vpop.permute.xlu0 %197
        %v200 = vmul.f32 %v166, %v198
        %202 = vset.pattern.permute.xlu0 0
        %203 = vperm.xlu0 %202, %v194
        %v204 = vpop.permute.xlu0 %203
        %v206 = vadd.f32 %v200, %v204
        %207 = vst [vmem:[%s161] sm:$0xf] %v206
        %s208 = sand.u32 %s93, 1
        %s209 = scalar_lea.sflag [#allocation3], %s208
        %s210 = sand.u32 %s93, 1
        %s211 = smul.addr %s210, 4
        %s212 = scalar_lea.vmem [#allocation2], %s211
        // Predicated region
        $region33: #{tpu_custom_call.1} parent=31 // pred_check
          %p213 = pneg %p103
        $region34: #{tpu_custom_call.1} parent=31 // pred_check_branch
          %215 = sbr.rel (%p213) target = $region36
        $region35: #{tpu_custom_call.1} parent=31 // pred_region
          %s217 = ssub.s32 64, 64
          %218 = vsyncadd %s209, %s217
          %s219 = smul.addr %s17, 64
          %s220 = scalar_lea.hbm %s3, %s219
          %s222 = sshll.u32 %s212, 4
          %s223 = int_to_ptr.vmem [resolvable:$true] %s222
          %225 = dma.vmem_to_hbm [thread:$0]  %s223, 64, %s220, %s209
        $region36: #{tpu_custom_call.1} parent=31 // pred_fallthru
          _
      $region32: #{tpu_custom_call.1} parent=5 // pred_fallthru
        _
      %p226 = scmp.le.s32.totalorder 2, %s12
      // Predicated region
      $region37: #{tpu_custom_call.1} parent=5 // pred_check
        %p227 = pneg %p226
      $region38: #{tpu_custom_call.1} parent=5 // pred_check_branch
        %229 = sbr.rel (%p227) target = $region40
      $region39: #{tpu_custom_call.1} parent=5 // pred_region
        %s230 = ssub.s32 %s12, 2
        // Predicated region
        $region41: #{tpu_custom_call.1} parent=39 // pred_check
          %p231 = pneg %p109
        $region42: #{tpu_custom_call.1} parent=39 // pred_check_branch
          %233 = sbr.rel (%p231) target = $region44
        $region43: #{tpu_custom_call.1} parent=39 // pred_region
          %s234 = sand.u32 %s94, 1
          %s235 = scalar_lea.sflag [#allocation3], %s234
          %s236 = sand.u32 %s94, 1
          %s237 = smul.addr %s236, 4
          %s238 = scalar_lea.vmem [#allocation2], %s237
          %239 = dma.done %s235, 64
        $region44: #{tpu_custom_call.1} parent=39 // pred_fallthru
          _
      $region40: #{tpu_custom_call.1} parent=5 // pred_fallthru
        _
    $region6: #{tpu_custom_call.1} parent=1 // loop_footer
      %s16 = sadd.s32 1, %s12
    $region7: #{tpu_custom_call.1} parent=1 // loop_footer_branch
      %11 = sbr.rel target = $region3
    $region8: #{tpu_custom_call.1} parent=1 // loop_exit
      _
    %240 = vsyncpa [#allocation3], 1
    %s241 = scalar_lea.sflag [#allocation3], 1
    %242 = vsyncpa %s241, 1

</llo_original>
